<compile_context>
chip_gen: v5e
topology: v5e:2x2
jax: 0.10.0
libtpu: 0.0.40
codegen_flags: <defaults>
</compile_context>

<pallas_src>
import math
import jax
import jax.numpy as jnp
from jax.experimental import pallas as pl
from jax.experimental.pallas import tpu as pltpu


def gru_kernel(x_ref, p_ref, out_ref):
    """Whole GRU forward in one kernel invocation.

    x_ref  : (S*Bp, I)      time-major input, batch zero-padded to Bp=8
    p_ref  : (I+W+2, 3W)    packed params, W = H+1 (last lane of each gate
                            block is the constant-1 lane):
                              rows 0..I-1    : W_ih^T  (gate order r|z|n)
                              rows I..I+W-1  : W_hh^T, row H carries b_hn
                              row  I+W       : folded gate biases (+40 on the
                                               z-gate const lane)
                              row  I+W+1     : [w_lin | b_lin | 0...]
    out_ref: (Bp, 1)        final prediction (padded rows are garbage)
    """
    Bp = out_ref.shape[0]
    SBp, I = x_ref.shape
    S = SBp // Bp
    G3 = p_ref.shape[1]
    W = G3 // 3                     # H + 1

    # Unpack the parameter slab once (preamble, off the serial path).
    p = p_ref[...]
    w_ih = p[0:I, :]                           # (I, 3W)
    w_hh = p[I:I + W, :]                       # (W, 3W)
    b_gi = p[I + W:I + W + 1, :]               # (1, 3W)
    w_lin = p[I + W + 1:I + W + 2, 0:W]        # (1, W)   lane H = b_lin

    # Input projection for ALL timesteps in one MXU pass (hoisted off the
    # serial recurrent chain); r/z biases already folded into b_gi.
    gi_all = (jnp.dot(x_ref[...], w_ih, preferred_element_type=jnp.float32)
              + b_gi)                                        # (S*Bp, 3W)

    # Hidden state: lanes 0..H-1 = h, lane H = constant 1 (feeds b_hn through
    # the recurrent matmul and the Linear bias through the head).
    lane = jax.lax.broadcasted_iota(jnp.int32, (Bp, W), 1)
    h = jnp.where(lane == W - 1, 1.0, 0.0).astype(jnp.float32)

    # Serial recurrence: fully unrolled static loop; per step one small matmul,
    # one fused sigmoid, one tanh — shortest dependent chain.
    for t in range(S):
        gi = gi_all[t * Bp:(t + 1) * Bp, :]                  # sublane-aligned
        gh = jnp.dot(h, w_hh, preferred_element_type=jnp.float32)   # (Bp, 3W)
        rz = jax.nn.sigmoid(gi[:, 0:2 * W] + gh[:, 0:2 * W])        # fused r|z
        r = rz[:, 0:W]
        z = rz[:, W:2 * W]          # const lane: sigmoid(40) == 1 -> lane stays 1
        n = jnp.tanh(gi[:, 2 * W:] + r * gh[:, 2 * W:])      # b_hn via row H
        h = (1.0 - z) * n + z * h

    # Linear head (H -> 1) on the VPU; bias comes from the constant-1 lane.
    out_ref[...] = jnp.sum(h * w_lin, axis=-1, keepdims=True)


@jax.jit
def gru_model_forward(x, param_slab):
    """x: (batch, seq, input_size) f32  ->  (batch, 1) f32."""
    B, S, I = x.shape
    Bp = max(8, ((B + 7) // 8) * 8)          # pad batch to a sublane multiple

    x_tm = jnp.transpose(x, (1, 0, 2))                     # (S, B, I)
    x_tm = jnp.pad(x_tm, ((0, 0), (0, Bp - B), (0, 0)))    # (S, Bp, I)
    x_tm = x_tm.reshape(S * Bp, I)                         # timestep-major rows

    vmem = pl.BlockSpec(memory_space=pltpu.MemorySpace.VMEM)
    out_pad = pl.pallas_call(
        gru_kernel,
        out_shape=jax.ShapeDtypeStruct((Bp, 1), jnp.float32),
        in_specs=[vmem, vmem],               # whole (tiny) arrays resident in VMEM
        out_specs=vmem,
        compiler_params=pltpu.CompilerParams(
            # let the transpose/pad/reshape of x fuse into operand 0
            allow_input_fusion=[True, False]),
    )(x_tm, param_slab)
    return out_pad[:B]


def init_params(key, input_size, hidden_size, output_size):
    """Raw PyTorch-layout params, U(-1/sqrt(H), 1/sqrt(H)) init."""
    ks = jax.random.split(key, 6)
    bound = 1.0 / math.sqrt(hidden_size)
    u = lambda k, shape: jax.random.uniform(k, shape, jnp.float32, -bound, bound)
    w_ih = u(ks[0], (3 * hidden_size, input_size))   # (3H, I), gate order r|z|n
    w_hh = u(ks[1], (3 * hidden_size, hidden_size))  # (3H, H)
    b_ih = u(ks[2], (3 * hidden_size,))
    b_hh = u(ks[3], (3 * hidden_size,))
    w_lin = u(ks[4], (output_size, hidden_size))     # (O, H)
    b_lin = u(ks[5], (output_size,))
    return (w_ih, w_hh, b_ih, b_hh, w_lin, b_lin)


def pack_params(raw_params, big=40.0):
    """Fold/transpose raw PyTorch-layout params into one kernel slab.

    Layout: W = H+1, gate width W with the last lane of every gate block being
    the constant-1 lane.  Row H of the packed W_hh carries b_hn (matmul fold);
    the z-gate bias on the const lane is `big` so the const lane of h stays 1.
    """
    w_ih, w_hh, b_ih, b_hh, w_lin, b_lin = raw_params
    H = w_hh.shape[1]
    assert w_lin.shape[0] == 1, "packed VPU head assumes output_size == 1"
    W = H + 1

    def pad1(m):   # (rows, H) -> (rows, W): zero column for the const lane
        return jnp.pad(m, ((0, 0), (0, 1)))

    w_ir, w_iz, w_in = w_ih[0:H].T, w_ih[H:2 * H].T, w_ih[2 * H:].T   # (I, H)
    w_hr, w_hz, w_hn = w_hh[0:H].T, w_hh[H:2 * H].T, w_hh[2 * H:].T   # (H, H)

    w_ih_p = jnp.concatenate([pad1(w_ir), pad1(w_iz), pad1(w_in)], axis=1)  # (I, 3W)
    w_hh_p = jnp.concatenate([pad1(w_hr), pad1(w_hz), pad1(w_hn)], axis=1)  # (H, 3W)
    # Row H (multiplied by the const-1 lane of h): injects b_hn inside the n-gate.
    b_hn_row = jnp.concatenate([jnp.zeros((2 * W,), jnp.float32),
                                b_hh[2 * H:],
                                jnp.zeros((1,), jnp.float32)]).reshape(1, 3 * W)
    w_hh_p = jnp.concatenate([w_hh_p, b_hn_row], axis=0)                    # (W, 3W)

    zero1 = jnp.zeros((1,), jnp.float32)
    b_gi = jnp.concatenate([
        b_ih[0:H] + b_hh[0:H],           zero1,                       # r block
        b_ih[H:2 * H] + b_hh[H:2 * H],   jnp.full((1,), big, jnp.float32),  # z
        b_ih[2 * H:],                    zero1,                       # n block
    ]).reshape(1, 3 * W)

    head = jnp.concatenate([w_lin.reshape(H), b_lin.reshape(1),
                            jnp.zeros((3 * W - W,), jnp.float32)]).reshape(1, 3 * W)

    slab = jnp.concatenate([w_ih_p, w_hh_p, b_gi, head], axis=0)      # (I+W+2, 3W)
    return slab.astype(jnp.float32)


def gru_reference(x, raw_params):
    """Pure-JAX reference with the exact (un-folded) PyTorch math."""
    w_ih, w_hh, b_ih, b_hh, w_lin, b_lin = raw_params
    H = w_hh.shape[1]
    B = x.shape[0]

    def step(h, x_t):
        gi = x_t @ w_ih.T + b_ih
        gh = h @ w_hh.T + b_hh
        r = jax.nn.sigmoid(gi[:, 0:H] + gh[:, 0:H])
        z = jax.nn.sigmoid(gi[:, H:2 * H] + gh[:, H:2 * H])
        n = jnp.tanh(gi[:, 2 * H:] + r * gh[:, 2 * H:])
        return (1.0 - z) * n + z * h, None

    h0 = jnp.zeros((B, H), jnp.float32)
    h_last, _ = jax.lax.scan(step, h0, jnp.transpose(x, (1, 0, 2)))
    return h_last @ w_lin.T + b_lin


if __name__ == "__main__":
    # Shapes implied by GRUModel defaults: input_size=8, hidden_size=32, output_size=1.
    batch, seq, input_size, hidden_size, output_size = 4, 8, 8, 32, 1

    key = jax.random.PRNGKey(0)
    k_x, k_p = jax.random.split(key)
    x = jax.random.normal(k_x, (batch, seq, input_size), jnp.float32)
    raw_params = init_params(k_p, input_size, hidden_size, output_size)
    param_slab = pack_params(raw_params)

    out = jax.block_until_ready(gru_model_forward(x, param_slab))
    ref = gru_reference(x, raw_params)

    assert out.shape == (batch, output_size), out.shape
    assert jnp.allclose(out, ref, atol=2e-5, rtol=2e-5), (out, ref)

    print("KERNEL_OK")
</pallas_src>

<mosaic_0001>
module attributes {stable_mosaic.version = 11 : i64} {
  func.func @gru_kernel(%arg0: memref<64x8xf32, #tpu.memory_space<vmem>>, %arg1: memref<43x99xf32, #tpu.memory_space<vmem>>, %arg2: memref<8x1xf32, #tpu.memory_space<vmem>>) attributes {dimension_semantics = [], scalar_prefetch = 0 : i64, scratch_operands = 0 : i64, tpu.core_type = #tpu.core_type<tc>} {
    %c0 = arith.constant 0 : index
    %c0_0 = arith.constant 0 : index
    %0 = vector.load %arg1[%c0, %c0_0] : memref<43x99xf32, #tpu.memory_space<vmem>>, vector<43x99xf32>
    %1 = vector.extract_strided_slice %0 {offsets = [0, 0], sizes = [8, 99], strides = [1, 1]} : vector<43x99xf32> to vector<8x99xf32>
    %2 = vector.extract_strided_slice %0 {offsets = [8, 0], sizes = [33, 99], strides = [1, 1]} : vector<43x99xf32> to vector<33x99xf32>
    %3 = vector.extract_strided_slice %0 {offsets = [41, 0], sizes = [1, 99], strides = [1, 1]} : vector<43x99xf32> to vector<1x99xf32>
    %4 = vector.extract_strided_slice %0 {offsets = [42, 0], sizes = [1, 33], strides = [1, 1]} : vector<43x99xf32> to vector<1x33xf32>
    %c0_1 = arith.constant 0 : index
    %c0_2 = arith.constant 0 : index
    %5 = vector.load %arg0[%c0_1, %c0_2] : memref<64x8xf32, #tpu.memory_space<vmem>>, vector<64x8xf32>
    %cst = arith.constant dense<0.000000e+00> : vector<64x99xf32>
    %6 = tpu.matmul %5, %1, %cst {dimension_numbers = #tpu.dot_dimension_numbers<[1], [0], [0], [1], [0, 0, 1, 1], [], []>} : vector<64x8xf32>, vector<8x99xf32>, vector<64x99xf32> -> vector<64x99xf32>
    %7 = vector.broadcast %3 : vector<1x99xf32> to vector<64x99xf32>
    %8 = arith.addf %6, %7 : vector<64x99xf32>
    %9 = tpu.iota {dimensions = array<i32: 1>} : vector<8x33xi32>
    %c32_i32 = arith.constant 32 : i32
    %10 = vector.broadcast %c32_i32 : i32 to vector<8x33xi32>
    %11 = arith.cmpi eq, %9, %10 : vector<8x33xi32>
    %cst_3 = arith.constant 1.000000e+00 : f32
    %cst_4 = arith.constant 0.000000e+00 : f32
    %12 = vector.broadcast %cst_3 : f32 to vector<8x33xf32>
    %13 = vector.broadcast %cst_4 : f32 to vector<8x33xf32>
    %14 = arith.select %11, %12, %13 : vector<8x33xi1>, vector<8x33xf32>
    %15 = vector.extract_strided_slice %8 {offsets = [0, 0], sizes = [8, 99], strides = [1, 1]} : vector<64x99xf32> to vector<8x99xf32>
    %cst_5 = arith.constant dense<0.000000e+00> : vector<8x99xf32>
    %16 = tpu.matmul %14, %2, %cst_5 {dimension_numbers = #tpu.dot_dimension_numbers<[1], [0], [0], [1], [0, 0, 1, 1], [], []>} : vector<8x33xf32>, vector<33x99xf32>, vector<8x99xf32> -> vector<8x99xf32>
    %17 = vector.extract_strided_slice %15 {offsets = [0, 0], sizes = [8, 66], strides = [1, 1]} : vector<8x99xf32> to vector<8x66xf32>
    %18 = vector.extract_strided_slice %16 {offsets = [0, 0], sizes = [8, 66], strides = [1, 1]} : vector<8x99xf32> to vector<8x66xf32>
    %19 = arith.addf %17, %18 : vector<8x66xf32>
    %20 = arith.negf %19 : vector<8x66xf32>
    %21 = math.exp %20 : vector<8x66xf32>
    %cst_6 = arith.constant 1.000000e+00 : f32
    %22 = vector.broadcast %cst_6 : f32 to vector<8x66xf32>
    %23 = arith.addf %22, %21 : vector<8x66xf32>
    %24 = arith.divf %22, %23 : vector<8x66xf32>
    %25 = vector.extract_strided_slice %24 {offsets = [0, 0], sizes = [8, 33], strides = [1, 1]} : vector<8x66xf32> to vector<8x33xf32>
    %26 = vector.extract_strided_slice %24 {offsets = [0, 33], sizes = [8, 33], strides = [1, 1]} : vector<8x66xf32> to vector<8x33xf32>
    %27 = vector.extract_strided_slice %15 {offsets = [0, 66], sizes = [8, 33], strides = [1, 1]} : vector<8x99xf32> to vector<8x33xf32>
    %28 = vector.extract_strided_slice %16 {offsets = [0, 66], sizes = [8, 33], strides = [1, 1]} : vector<8x99xf32> to vector<8x33xf32>
    %29 = arith.mulf %25, %28 : vector<8x33xf32>
    %30 = arith.addf %27, %29 : vector<8x33xf32>
    %31 = math.tanh %30 : vector<8x33xf32>
    %cst_7 = arith.constant 1.000000e+00 : f32
    %32 = vector.broadcast %cst_7 : f32 to vector<8x33xf32>
    %33 = arith.subf %32, %26 : vector<8x33xf32>
    %34 = arith.mulf %33, %31 : vector<8x33xf32>
    %35 = arith.mulf %26, %14 : vector<8x33xf32>
    %36 = arith.addf %34, %35 : vector<8x33xf32>
    %37 = vector.extract_strided_slice %8 {offsets = [8, 0], sizes = [8, 99], strides = [1, 1]} : vector<64x99xf32> to vector<8x99xf32>
    %cst_8 = arith.constant dense<0.000000e+00> : vector<8x99xf32>
    %38 = tpu.matmul %36, %2, %cst_8 {dimension_numbers = #tpu.dot_dimension_numbers<[1], [0], [0], [1], [0, 0, 1, 1], [], []>} : vector<8x33xf32>, vector<33x99xf32>, vector<8x99xf32> -> vector<8x99xf32>
    %39 = vector.extract_strided_slice %37 {offsets = [0, 0], sizes = [8, 66], strides = [1, 1]} : vector<8x99xf32> to vector<8x66xf32>
    %40 = vector.extract_strided_slice %38 {offsets = [0, 0], sizes = [8, 66], strides = [1, 1]} : vector<8x99xf32> to vector<8x66xf32>
    %41 = arith.addf %39, %40 : vector<8x66xf32>
    %42 = arith.negf %41 : vector<8x66xf32>
    %43 = math.exp %42 : vector<8x66xf32>
    %cst_9 = arith.constant 1.000000e+00 : f32
    %44 = vector.broadcast %cst_9 : f32 to vector<8x66xf32>
    %45 = arith.addf %44, %43 : vector<8x66xf32>
    %46 = arith.divf %44, %45 : vector<8x66xf32>
    %47 = vector.extract_strided_slice %46 {offsets = [0, 0], sizes = [8, 33], strides = [1, 1]} : vector<8x66xf32> to vector<8x33xf32>
    %48 = vector.extract_strided_slice %46 {offsets = [0, 33], sizes = [8, 33], strides = [1, 1]} : vector<8x66xf32> to vector<8x33xf32>
    %49 = vector.extract_strided_slice %37 {offsets = [0, 66], sizes = [8, 33], strides = [1, 1]} : vector<8x99xf32> to vector<8x33xf32>
    %50 = vector.extract_strided_slice %38 {offsets = [0, 66], sizes = [8, 33], strides = [1, 1]} : vector<8x99xf32> to vector<8x33xf32>
    %51 = arith.mulf %47, %50 : vector<8x33xf32>
    %52 = arith.addf %49, %51 : vector<8x33xf32>
    %53 = math.tanh %52 : vector<8x33xf32>
    %cst_10 = arith.constant 1.000000e+00 : f32
    %54 = vector.broadcast %cst_10 : f32 to vector<8x33xf32>
    %55 = arith.subf %54, %48 : vector<8x33xf32>
    %56 = arith.mulf %55, %53 : vector<8x33xf32>
    %57 = arith.mulf %48, %36 : vector<8x33xf32>
    %58 = arith.addf %56, %57 : vector<8x33xf32>
    %59 = vector.extract_strided_slice %8 {offsets = [16, 0], sizes = [8, 99], strides = [1, 1]} : vector<64x99xf32> to vector<8x99xf32>
    %cst_11 = arith.constant dense<0.000000e+00> : vector<8x99xf32>
    %60 = tpu.matmul %58, %2, %cst_11 {dimension_numbers = #tpu.dot_dimension_numbers<[1], [0], [0], [1], [0, 0, 1, 1], [], []>} : vector<8x33xf32>, vector<33x99xf32>, vector<8x99xf32> -> vector<8x99xf32>
    %61 = vector.extract_strided_slice %59 {offsets = [0, 0], sizes = [8, 66], strides = [1, 1]} : vector<8x99xf32> to vector<8x66xf32>
    %62 = vector.extract_strided_slice %60 {offsets = [0, 0], sizes = [8, 66], strides = [1, 1]} : vector<8x99xf32> to vector<8x66xf32>
    %63 = arith.addf %61, %62 : vector<8x66xf32>
    %64 = arith.negf %63 : vector<8x66xf32>
    %65 = math.exp %64 : vector<8x66xf32>
    %cst_12 = arith.constant 1.000000e+00 : f32
    %66 = vector.broadcast %cst_12 : f32 to vector<8x66xf32>
    %67 = arith.addf %66, %65 : vector<8x66xf32>
    %68 = arith.divf %66, %67 : vector<8x66xf32>
    %69 = vector.extract_strided_slice %68 {offsets = [0, 0], sizes = [8, 33], strides = [1, 1]} : vector<8x66xf32> to vector<8x33xf32>
    %70 = vector.extract_strided_slice %68 {offsets = [0, 33], sizes = [8, 33], strides = [1, 1]} : vector<8x66xf32> to vector<8x33xf32>
    %71 = vector.extract_strided_slice %59 {offsets = [0, 66], sizes = [8, 33], strides = [1, 1]} : vector<8x99xf32> to vector<8x33xf32>
    %72 = vector.extract_strided_slice %60 {offsets = [0, 66], sizes = [8, 33], strides = [1, 1]} : vector<8x99xf32> to vector<8x33xf32>
    %73 = arith.mulf %69, %72 : vector<8x33xf32>
    %74 = arith.addf %71, %73 : vector<8x33xf32>
    %75 = math.tanh %74 : vector<8x33xf32>
    %cst_13 = arith.constant 1.000000e+00 : f32
    %76 = vector.broadcast %cst_13 : f32 to vector<8x33xf32>
    %77 = arith.subf %76, %70 : vector<8x33xf32>
    %78 = arith.mulf %77, %75 : vector<8x33xf32>
    %79 = arith.mulf %70, %58 : vector<8x33xf32>
    %80 = arith.addf %78, %79 : vector<8x33xf32>
    %81 = vector.extract_strided_slice %8 {offsets = [24, 0], sizes = [8, 99], strides = [1, 1]} : vector<64x99xf32> to vector<8x99xf32>
    %cst_14 = arith.constant dense<0.000000e+00> : vector<8x99xf32>
    %82 = tpu.matmul %80, %2, %cst_14 {dimension_numbers = #tpu.dot_dimension_numbers<[1], [0], [0], [1], [0, 0, 1, 1], [], []>} : vector<8x33xf32>, vector<33x99xf32>, vector<8x99xf32> -> vector<8x99xf32>
    %83 = vector.extract_strided_slice %81 {offsets = [0, 0], sizes = [8, 66], strides = [1, 1]} : vector<8x99xf32> to vector<8x66xf32>
    %84 = vector.extract_strided_slice %82 {offsets = [0, 0], sizes = [8, 66], strides = [1, 1]} : vector<8x99xf32> to vector<8x66xf32>
    %85 = arith.addf %83, %84 : vector<8x66xf32>
    %86 = arith.negf %85 : vector<8x66xf32>
    %87 = math.exp %86 : vector<8x66xf32>
    %cst_15 = arith.constant 1.000000e+00 : f32
    %88 = vector.broadcast %cst_15 : f32 to vector<8x66xf32>
    %89 = arith.addf %88, %87 : vector<8x66xf32>
    %90 = arith.divf %88, %89 : vector<8x66xf32>
    %91 = vector.extract_strided_slice %90 {offsets = [0, 0], sizes = [8, 33], strides = [1, 1]} : vector<8x66xf32> to vector<8x33xf32>
    %92 = vector.extract_strided_slice %90 {offsets = [0, 33], sizes = [8, 33], strides = [1, 1]} : vector<8x66xf32> to vector<8x33xf32>
    %93 = vector.extract_strided_slice %81 {offsets = [0, 66], sizes = [8, 33], strides = [1, 1]} : vector<8x99xf32> to vector<8x33xf32>
    %94 = vector.extract_strided_slice %82 {offsets = [0, 66], sizes = [8, 33], strides = [1, 1]} : vector<8x99xf32> to vector<8x33xf32>
    %95 = arith.mulf %91, %94 : vector<8x33xf32>
    %96 = arith.addf %93, %95 : vector<8x33xf32>
    %97 = math.tanh %96 : vector<8x33xf32>
    %cst_16 = arith.constant 1.000000e+00 : f32
    %98 = vector.broadcast %cst_16 : f32 to vector<8x33xf32>
    %99 = arith.subf %98, %92 : vector<8x33xf32>
    %100 = arith.mulf %99, %97 : vector<8x33xf32>
    %101 = arith.mulf %92, %80 : vector<8x33xf32>
    %102 = arith.addf %100, %101 : vector<8x33xf32>
    %103 = vector.extract_strided_slice %8 {offsets = [32, 0], sizes = [8, 99], strides = [1, 1]} : vector<64x99xf32> to vector<8x99xf32>
    %cst_17 = arith.constant dense<0.000000e+00> : vector<8x99xf32>
    %104 = tpu.matmul %102, %2, %cst_17 {dimension_numbers = #tpu.dot_dimension_numbers<[1], [0], [0], [1], [0, 0, 1, 1], [], []>} : vector<8x33xf32>, vector<33x99xf32>, vector<8x99xf32> -> vector<8x99xf32>
    %105 = vector.extract_strided_slice %103 {offsets = [0, 0], sizes = [8, 66], strides = [1, 1]} : vector<8x99xf32> to vector<8x66xf32>
    %106 = vector.extract_strided_slice %104 {offsets = [0, 0], sizes = [8, 66], strides = [1, 1]} : vector<8x99xf32> to vector<8x66xf32>
    %107 = arith.addf %105, %106 : vector<8x66xf32>
    %108 = arith.negf %107 : vector<8x66xf32>
    %109 = math.exp %108 : vector<8x66xf32>
    %cst_18 = arith.constant 1.000000e+00 : f32
    %110 = vector.broadcast %cst_18 : f32 to vector<8x66xf32>
    %111 = arith.addf %110, %109 : vector<8x66xf32>
    %112 = arith.divf %110, %111 : vector<8x66xf32>
    %113 = vector.extract_strided_slice %112 {offsets = [0, 0], sizes = [8, 33], strides = [1, 1]} : vector<8x66xf32> to vector<8x33xf32>
    %114 = vector.extract_strided_slice %112 {offsets = [0, 33], sizes = [8, 33], strides = [1, 1]} : vector<8x66xf32> to vector<8x33xf32>
    %115 = vector.extract_strided_slice %103 {offsets = [0, 66], sizes = [8, 33], strides = [1, 1]} : vector<8x99xf32> to vector<8x33xf32>
    %116 = vector.extract_strided_slice %104 {offsets = [0, 66], sizes = [8, 33], strides = [1, 1]} : vector<8x99xf32> to vector<8x33xf32>
    %117 = arith.mulf %113, %116 : vector<8x33xf32>
    %118 = arith.addf %115, %117 : vector<8x33xf32>
    %119 = math.tanh %118 : vector<8x33xf32>
    %cst_19 = arith.constant 1.000000e+00 : f32
    %120 = vector.broadcast %cst_19 : f32 to vector<8x33xf32>
    %121 = arith.subf %120, %114 : vector<8x33xf32>
    %122 = arith.mulf %121, %119 : vector<8x33xf32>
    %123 = arith.mulf %114, %102 : vector<8x33xf32>
    %124 = arith.addf %122, %123 : vector<8x33xf32>
    %125 = vector.extract_strided_slice %8 {offsets = [40, 0], sizes = [8, 99], strides = [1, 1]} : vector<64x99xf32> to vector<8x99xf32>
    %cst_20 = arith.constant dense<0.000000e+00> : vector<8x99xf32>
    %126 = tpu.matmul %124, %2, %cst_20 {dimension_numbers = #tpu.dot_dimension_numbers<[1], [0], [0], [1], [0, 0, 1, 1], [], []>} : vector<8x33xf32>, vector<33x99xf32>, vector<8x99xf32> -> vector<8x99xf32>
    %127 = vector.extract_strided_slice %125 {offsets = [0, 0], sizes = [8, 66], strides = [1, 1]} : vector<8x99xf32> to vector<8x66xf32>
    %128 = vector.extract_strided_slice %126 {offsets = [0, 0], sizes = [8, 66], strides = [1, 1]} : vector<8x99xf32> to vector<8x66xf32>
    %129 = arith.addf %127, %128 : vector<8x66xf32>
    %130 = arith.negf %129 : vector<8x66xf32>
    %131 = math.exp %130 : vector<8x66xf32>
    %cst_21 = arith.constant 1.000000e+00 : f32
    %132 = vector.broadcast %cst_21 : f32 to vector<8x66xf32>
    %133 = arith.addf %132, %131 : vector<8x66xf32>
    %134 = arith.divf %132, %133 : vector<8x66xf32>
    %135 = vector.extract_strided_slice %134 {offsets = [0, 0], sizes = [8, 33], strides = [1, 1]} : vector<8x66xf32> to vector<8x33xf32>
    %136 = vector.extract_strided_slice %134 {offsets = [0, 33], sizes = [8, 33], strides = [1, 1]} : vector<8x66xf32> to vector<8x33xf32>
    %137 = vector.extract_strided_slice %125 {offsets = [0, 66], sizes = [8, 33], strides = [1, 1]} : vector<8x99xf32> to vector<8x33xf32>
    %138 = vector.extract_strided_slice %126 {offsets = [0, 66], sizes = [8, 33], strides = [1, 1]} : vector<8x99xf32> to vector<8x33xf32>
    %139 = arith.mulf %135, %138 : vector<8x33xf32>
    %140 = arith.addf %137, %139 : vector<8x33xf32>
    %141 = math.tanh %140 : vector<8x33xf32>
    %cst_22 = arith.constant 1.000000e+00 : f32
    %142 = vector.broadcast %cst_22 : f32 to vector<8x33xf32>
    %143 = arith.subf %142, %136 : vector<8x33xf32>
    %144 = arith.mulf %143, %141 : vector<8x33xf32>
    %145 = arith.mulf %136, %124 : vector<8x33xf32>
    %146 = arith.addf %144, %145 : vector<8x33xf32>
    %147 = vector.extract_strided_slice %8 {offsets = [48, 0], sizes = [8, 99], strides = [1, 1]} : vector<64x99xf32> to vector<8x99xf32>
    %cst_23 = arith.constant dense<0.000000e+00> : vector<8x99xf32>
    %148 = tpu.matmul %146, %2, %cst_23 {dimension_numbers = #tpu.dot_dimension_numbers<[1], [0], [0], [1], [0, 0, 1, 1], [], []>} : vector<8x33xf32>, vector<33x99xf32>, vector<8x99xf32> -> vector<8x99xf32>
    %149 = vector.extract_strided_slice %147 {offsets = [0, 0], sizes = [8, 66], strides = [1, 1]} : vector<8x99xf32> to vector<8x66xf32>
    %150 = vector.extract_strided_slice %148 {offsets = [0, 0], sizes = [8, 66], strides = [1, 1]} : vector<8x99xf32> to vector<8x66xf32>
    %151 = arith.addf %149, %150 : vector<8x66xf32>
    %152 = arith.negf %151 : vector<8x66xf32>
    %153 = math.exp %152 : vector<8x66xf32>
    %cst_24 = arith.constant 1.000000e+00 : f32
    %154 = vector.broadcast %cst_24 : f32 to vector<8x66xf32>
    %155 = arith.addf %154, %153 : vector<8x66xf32>
    %156 = arith.divf %154, %155 : vector<8x66xf32>
    %157 = vector.extract_strided_slice %156 {offsets = [0, 0], sizes = [8, 33], strides = [1, 1]} : vector<8x66xf32> to vector<8x33xf32>
    %158 = vector.extract_strided_slice %156 {offsets = [0, 33], sizes = [8, 33], strides = [1, 1]} : vector<8x66xf32> to vector<8x33xf32>
    %159 = vector.extract_strided_slice %147 {offsets = [0, 66], sizes = [8, 33], strides = [1, 1]} : vector<8x99xf32> to vector<8x33xf32>
    %160 = vector.extract_strided_slice %148 {offsets = [0, 66], sizes = [8, 33], strides = [1, 1]} : vector<8x99xf32> to vector<8x33xf32>
    %161 = arith.mulf %157, %160 : vector<8x33xf32>
    %162 = arith.addf %159, %161 : vector<8x33xf32>
    %163 = math.tanh %162 : vector<8x33xf32>
    %cst_25 = arith.constant 1.000000e+00 : f32
    %164 = vector.broadcast %cst_25 : f32 to vector<8x33xf32>
    %165 = arith.subf %164, %158 : vector<8x33xf32>
    %166 = arith.mulf %165, %163 : vector<8x33xf32>
    %167 = arith.mulf %158, %146 : vector<8x33xf32>
    %168 = arith.addf %166, %167 : vector<8x33xf32>
    %169 = vector.extract_strided_slice %8 {offsets = [56, 0], sizes = [8, 99], strides = [1, 1]} : vector<64x99xf32> to vector<8x99xf32>
    %cst_26 = arith.constant dense<0.000000e+00> : vector<8x99xf32>
    %170 = tpu.matmul %168, %2, %cst_26 {dimension_numbers = #tpu.dot_dimension_numbers<[1], [0], [0], [1], [0, 0, 1, 1], [], []>} : vector<8x33xf32>, vector<33x99xf32>, vector<8x99xf32> -> vector<8x99xf32>
    %171 = vector.extract_strided_slice %169 {offsets = [0, 0], sizes = [8, 66], strides = [1, 1]} : vector<8x99xf32> to vector<8x66xf32>
    %172 = vector.extract_strided_slice %170 {offsets = [0, 0], sizes = [8, 66], strides = [1, 1]} : vector<8x99xf32> to vector<8x66xf32>
    %173 = arith.addf %171, %172 : vector<8x66xf32>
    %174 = arith.negf %173 : vector<8x66xf32>
    %175 = math.exp %174 : vector<8x66xf32>
    %cst_27 = arith.constant 1.000000e+00 : f32
    %176 = vector.broadcast %cst_27 : f32 to vector<8x66xf32>
    %177 = arith.addf %176, %175 : vector<8x66xf32>
    %178 = arith.divf %176, %177 : vector<8x66xf32>
    %179 = vector.extract_strided_slice %178 {offsets = [0, 0], sizes = [8, 33], strides = [1, 1]} : vector<8x66xf32> to vector<8x33xf32>
    %180 = vector.extract_strided_slice %178 {offsets = [0, 33], sizes = [8, 33], strides = [1, 1]} : vector<8x66xf32> to vector<8x33xf32>
    %181 = vector.extract_strided_slice %169 {offsets = [0, 66], sizes = [8, 33], strides = [1, 1]} : vector<8x99xf32> to vector<8x33xf32>
    %182 = vector.extract_strided_slice %170 {offsets = [0, 66], sizes = [8, 33], strides = [1, 1]} : vector<8x99xf32> to vector<8x33xf32>
    %183 = arith.mulf %179, %182 : vector<8x33xf32>
    %184 = arith.addf %181, %183 : vector<8x33xf32>
    %185 = math.tanh %184 : vector<8x33xf32>
    %cst_28 = arith.constant 1.000000e+00 : f32
    %186 = vector.broadcast %cst_28 : f32 to vector<8x33xf32>
    %187 = arith.subf %186, %180 : vector<8x33xf32>
    %188 = arith.mulf %187, %185 : vector<8x33xf32>
    %189 = arith.mulf %180, %168 : vector<8x33xf32>
    %190 = arith.addf %188, %189 : vector<8x33xf32>
    %191 = vector.broadcast %4 : vector<1x33xf32> to vector<8x33xf32>
    %192 = arith.mulf %190, %191 : vector<8x33xf32>
    %cst_29 = arith.constant dense<0.000000e+00> : vector<8xf32>
    %193 = vector.multi_reduction <add>, %192, %cst_29 [1] : vector<8x33xf32> to vector<8xf32>
    %194 = vector.shape_cast %193 : vector<8xf32> to vector<8x1xf32>
    %c0_30 = arith.constant 0 : index
    %c0_31 = arith.constant 0 : index
    %195 = vector.load %arg2[%c0_30, %c0_31] : memref<8x1xf32, #tpu.memory_space<vmem>>, vector<8x1xf32>
    tpu.vector_store %arg2[%c0_30, %c0_31], %194 {strides = array<i32>} : memref<8x1xf32, #tpu.memory_space<vmem>>, vector<8x1xf32>,
    return
  }
}

</mosaic_0001>

<llo_original>
// kernel: gru_model_forward.2
$region0: #{gru_model_forward.2}
  #allocation0 [shape = 'u32[]', space=smem, size = 0x4, offset = 0x4, fixed_abs, tag = 'smem constant byte address 0x4 - core index']
  #allocation1 [shape = 'u32[72,128]{1,0:T(1,128)}', space=vmem, size = 0x9000, scoped, tag = 'internal scratch']
  #allocation2 [shape = 'u32[2048]{0}', space=vmem, size = 0x2000, scoped, tag = 'scoped memory for gru_model_forward.2']
  #allocation3 [shape = 'u32[2048]{0}', space=vmem, size = 0x2000, scoped, tag = 'scoped memory for gru_model_forward.2']
  #allocation4 [shape = 'u32[2048]{0}', space=vmem, size = 0x2000, scoped, tag = 'scoped memory for gru_model_forward.2']
  #allocation5 [shape = 'u32[2048]{0}', space=vmem, size = 0x2000, scoped, tag = 'scoped memory for gru_model_forward.2']
  #allocation6 [shape = 'u32[2048]{0}', space=vmem, size = 0x2000, scoped, tag = 'scoped memory for gru_model_forward.2']
  %s0 = inlined_call_operand.vmem [shape: f32[43,99], index: 0, kind: input, shape index: {}]
  %s1 = inlined_call_operand.vmem [shape: f32[8,4,8], index: 1, kind: input, shape index: {}]
  %s2 = inlined_call_operand.<no memory space> [shape: f32[], index: 2, kind: input, shape index: {}]
  %s3 = inlined_call_operand.vmem [shape: f32[8,1], index: 3, kind: output, shape index: {}]
  %s4 = sld [smem:[#allocation0]]
  $region18: #{gru_model_forward.2} parent=0
    _
  %s6 = ssub.s32 1, %s4
  %s7 = scalar_select 0, %s6, %s4
  %v8 = vstv %s2
  $region1: #{gru_model_forward.2} parent=0
    #allocation7 [shape = 'u8[32768]{0}', space=vmem, size = 0x8000, dematerialized = true, scoped, tag = 'FusionAdapter Buffer %pad_bitcast_fusion.1 = f32[64,8]{1,0:T(8,128)} fusion(%param_1.3, %param_2), kind=kLoop, calls=%fused_computation.clone.clone, metadata={op_name="jit(gru_model_forward)/reshape" stack_frame_id=9}']
    // Predicated region
    $region2: #{gru_model_forward.2} parent=1 // pred_check
      _
    $region3: #{gru_model_forward.2} parent=1 // pred_check_branch
      %10 = sbr.rel (0) target = $region5
    $region4: #{gru_model_forward.2} parent=1 // pred_region
      _
    $region5: #{gru_model_forward.2} parent=1 // pred_fallthru
      _
    // Predicated region
    $region6: #{gru_model_forward.2} parent=1 // pred_check
      _
    $region7: #{gru_model_forward.2} parent=1 // pred_check_branch
      %12 = sbr.rel (0) target = $region9
    $region8: #{gru_model_forward.2} parent=1 // pred_region
      _
    $region9: #{gru_model_forward.2} parent=1 // pred_fallthru
      _
    %v13 = vld [vmem:[%s1] sm:$0xf]
    %v14 = vlaneseq
    %v15 = vshrl.u32 %v14, 7
    %vm17 = vcmp.lt.s32.totalorder %v15, 4
    %v18 = vsel %vm17, %v13, %v8
    %v19 = vlaneseq
    %v20 = vand.u32 %v19, 127
    %vm22 = vcmp.lt.s32.totalorder %v20, 8
    %v23 = vsel %vm22, %v18, %v8
    %s25 = ssub.s32 256, 1
    %26 = vst [vmem:[#allocation7] sm:%s25] %v23
    %s27 = scalar_lea.vmem %s1, 4
    %v28 = vld [vmem:[%s27] sm:$0xf]
    %v29 = vlaneseq
    %v30 = vshrl.u32 %v29, 7
    %vm32 = vcmp.lt.s32.totalorder %v30, 4
    %v33 = vsel %vm32, %v28, %v8
    %v34 = vlaneseq
    %v35 = vand.u32 %v34, 127
    %vm37 = vcmp.lt.s32.totalorder %v35, 8
    %v38 = vsel %vm37, %v33, %v8
    %s39 = scalar_lea.vmem [#allocation7], 8
    %s41 = ssub.s32 256, 1
    %42 = vst [vmem:[%s39] sm:%s41] %v38
    %s43 = scalar_lea.vmem %s1, 8
    %v44 = vld [vmem:[%s43] sm:$0xf]
    %v45 = vlaneseq
    %v46 = vshrl.u32 %v45, 7
    %vm48 = vcmp.lt.s32.totalorder %v46, 4
    %v49 = vsel %vm48, %v44, %v8
    %v50 = vlaneseq
    %v51 = vand.u32 %v50, 127
    %vm53 = vcmp.lt.s32.totalorder %v51, 8
    %v54 = vsel %vm53, %v49, %v8
    %s55 = scalar_lea.vmem [#allocation7], 16
    %s57 = ssub.s32 256, 1
    %58 = vst [vmem:[%s55] sm:%s57] %v54
    %s59 = scalar_lea.vmem %s1, 12
    %v60 = vld [vmem:[%s59] sm:$0xf]
    %v61 = vlaneseq
    %v62 = vshrl.u32 %v61, 7
    %vm64 = vcmp.lt.s32.totalorder %v62, 4
    %v65 = vsel %vm64, %v60, %v8
    %v66 = vlaneseq
    %v67 = vand.u32 %v66, 127
    %vm69 = vcmp.lt.s32.totalorder %v67, 8
    %v70 = vsel %vm69, %v65, %v8
    %s71 = scalar_lea.vmem [#allocation7], 24
    %s73 = ssub.s32 256, 1
    %74 = vst [vmem:[%s71] sm:%s73] %v70
    %s75 = scalar_lea.vmem %s1, 16
    %v76 = vld [vmem:[%s75] sm:$0xf]
    %v77 = vlaneseq
    %v78 = vshrl.u32 %v77, 7
    %vm80 = vcmp.lt.s32.totalorder %v78, 4
    %v81 = vsel %vm80, %v76, %v8
    %v82 = vlaneseq
    %v83 = vand.u32 %v82, 127
    %vm85 = vcmp.lt.s32.totalorder %v83, 8
    %v86 = vsel %vm85, %v81, %v8
    %s87 = scalar_lea.vmem [#allocation7], 32
    %s89 = ssub.s32 256, 1
    %90 = vst [vmem:[%s87] sm:%s89] %v86
    %s91 = scalar_lea.vmem %s1, 20
    %v92 = vld [vmem:[%s91] sm:$0xf]
    %v93 = vlaneseq
    %v94 = vshrl.u32 %v93, 7
    %vm96 = vcmp.lt.s32.totalorder %v94, 4
    %v97 = vsel %vm96, %v92, %v8
    %v98 = vlaneseq
    %v99 = vand.u32 %v98, 127
    %vm101 = vcmp.lt.s32.totalorder %v99, 8
    %v102 = vsel %vm101, %v97, %v8
    %s103 = scalar_lea.vmem [#allocation7], 40
    %s105 = ssub.s32 256, 1
    %106 = vst [vmem:[%s103] sm:%s105] %v102
    %s107 = scalar_lea.vmem %s1, 24
    %v108 = vld [vmem:[%s107] sm:$0xf]
    %v109 = vlaneseq
    %v110 = vshrl.u32 %v109, 7
    %vm112 = vcmp.lt.s32.totalorder %v110, 4
    %v113 = vsel %vm112, %v108, %v8
    %v114 = vlaneseq
    %v115 = vand.u32 %v114, 127
    %vm117 = vcmp.lt.s32.totalorder %v115, 8
    %v118 = vsel %vm117, %v113, %v8
    %s119 = scalar_lea.vmem [#allocation7], 48
    %s121 = ssub.s32 256, 1
    %122 = vst [vmem:[%s119] sm:%s121] %v118
    %s123 = scalar_lea.vmem %s1, 28
    %v124 = vld [vmem:[%s123] sm:$0xf]
    %v125 = vlaneseq
    %v126 = vshrl.u32 %v125, 7
    %vm128 = vcmp.lt.s32.totalorder %v126, 4
    %v129 = vsel %vm128, %v124, %v8
    %v130 = vlaneseq
    %v131 = vand.u32 %v130, 127
    %vm133 = vcmp.lt.s32.totalorder %v131, 8
    %v134 = vsel %vm133, %v129, %v8
    %s135 = scalar_lea.vmem [#allocation7], 56
    %s137 = ssub.s32 256, 1
    %138 = vst [vmem:[%s135] sm:%s137] %v134
    %v139 = vld [vmem:[%s0] sm:$0xff]
    %v140 = vld [vmem:[%s0 + $0x8] sm:$0xff]
    %v141 = vld [vmem:[%s0 + $0x10] sm:$0xff]
    %v142 = vld [vmem:[%s0 + $0x18] sm:$0xff]
    %v143 = vld [vmem:[%s0 + $0x20] sm:$0xff]
    %v144 = vld [vmem:[%s0 + $0x28] sm:$0x7]
    %v145 = vld [vmem:[#allocation7] sm:$0xff]
    %v146 = vld [vmem:[#allocation7 + $0x8] sm:$0xff]
    %v147 = vld [vmem:[#allocation7 + $0x10] sm:$0xff]
    %v148 = vld [vmem:[#allocation7 + $0x18] sm:$0xff]
    %v149 = vld [vmem:[#allocation7 + $0x20] sm:$0xff]
    %v150 = vld [vmem:[#allocation7 + $0x28] sm:$0xff]
    %v151 = vld [vmem:[#allocation7 + $0x30] sm:$0xff]
    %v152 = vld [vmem:[#allocation7 + $0x38] sm:$0xff]
    %v153 = vperm.slane %v144, 1
    %vm154 = vcmask 64512
    %v156 = vsel %vm154, %v145, 0
    %v159 = vsel %vm154, %v146, 0
    %v162 = vsel %vm154, %v147, 0
    %v165 = vsel %vm154, %v148, 0
    %v168 = vsel %vm154, %v149, 0
    %v171 = vsel %vm154, %v150, 0
    %v174 = vsel %vm154, %v151, 0
    %v177 = vsel %vm154, %v152, 0
    %179 = vmatpush.msra.mxu0 0.0
    %180 = vmatpush.msra.mxu0 0.0
    %181 = vmatpush.msra.mxu0 0.0
    %182 = vmatpush.msra.mxu0 0.0
    %183 = vmatpush.msra.mxu0 0.0
    %184 = vmatpush.msra.mxu0 0.0
    %185 = vmatpush.msra.mxu0 0.0
    %186 = vmatpush.msra.mxu0 0.0
    %187 = vmatpush.msra.mxu0 0.0
    %188 = vmatpush.msra.mxu0 0.0
    %189 = vmatpush.msra.mxu0 0.0
    %190 = vmatpush.msra.mxu0 0.0
    %191 = vmatpush.msra.mxu0 0.0
    %192 = vmatpush.msra.mxu0 0.0
    %193 = vmatpush.msra.mxu0 0.0
    %194 = vmatpush.msra.mxu0 %v139
    %195 = vmatmul.f32.gmra.mxu0 %v156
    %v196 = vpop.f32.mrf.mxu0
    %v197 = vadd.f32 %v153, %v196
    %198 = vmatmul.f32.gmra.mxu0 %v159
    %v199 = vpop.f32.mrf.mxu0
    %v200 = vadd.f32 %v153, %v199
    %201 = vmatmul.f32.gmra.mxu0 %v162
    %v202 = vpop.f32.mrf.mxu0
    %v203 = vadd.f32 %v153, %v202
    %204 = vmatmul.f32.gmra.mxu0 %v165
    %v205 = vpop.f32.mrf.mxu0
    %v206 = vadd.f32 %v153, %v205
    %207 = vmatmul.f32.gmra.mxu0 %v168
    %v208 = vpop.f32.mrf.mxu0
    %v209 = vadd.f32 %v153, %v208
    %210 = vmatmul.f32.gmra.mxu0 %v171
    %v211 = vpop.f32.mrf.mxu0
    %v212 = vadd.f32 %v153, %v211
    %213 = vmatmul.f32.gmra.mxu0 %v174
    %v214 = vpop.f32.mrf.mxu0
    %v215 = vadd.f32 %v153, %v214
    %216 = vmatmul.f32.gmra.mxu0 %v177
    %v217 = vpop.f32.mrf.mxu0
    %v218 = vadd.f32 %v153, %v217
    %219 = vdwg.mxu0
    %v220 = vlaneseq
    %v221 = vand.u32 %v220, 127
    %vm222 = vcmp.eq.s32.totalorder %v221, 32
    %v223 = vsel %vm222, 1.0, 0.0
    %vm224 = vcmask 269312
    %v226 = vsel %vm224, %v223, 0
    %vm228 = vcmask 1040384
    %v230 = vsel %vm228, %v144, 0
    %232 = vmatpush.msra.mxu0 0.0
    %233 = vmatpush.msra.mxu0 0.0
    %234 = vmatpush.msra.mxu0 0.0
    %235 = vmatpush.msra.mxu0 0.0
    %236 = vmatpush.msra.mxu0 0.0
    %237 = vmatpush.msra.mxu0 0.0
    %238 = vmatpush.msra.mxu0 0.0
    %239 = vmatpush.msra.mxu0 0.0
    %240 = vmatpush.msra.mxu0 0.0
    %241 = vmatpush.msra.mxu0 0.0
    %242 = vmatpush.msra.mxu0 0.0
    %243 = vmatpush.msra.mxu0 %v230
    %244 = vmatpush.msra.mxu0 %v143
    %245 = vmatpush.msra.mxu0 %v142
    %246 = vmatpush.msra.mxu0 %v141
    %247 = vmatpush.msra.mxu0 %v140
    %248 = vmatmul.f32.gmra.mxu0 %v226
    %v249 = vpop.f32.mrf.mxu0
    %v250 = vadd.f32 0.0, %v249
    %251 = vdwg.mxu0
    %v252 = vadd.f32 %v197, %v250
    %v253 = vxor.u32 %v252, 2147483648
    %v254 = vmul.f32 %v253, 1.442695
    %v255 = vpow.pop %v254
    %v256 = vadd.f32 %v255, 1.0
    %v257 = vrcp.pop %v256
    %v258 = vmul.f32 %v256, %v257
    %v259 = vsub.f32 1.0, %v258
    %v260 = vmul.f32 %v257, %v259
    %v261 = vadd.f32 %v257, %v260
    %vm262 = vweird.f32 %v256
    %vm263 = vweird.f32 %v257
    %vm264 = vmor %vm262, %vm263
    %v265 = vsel %vm264, %v257, %v261
    %v266 = vand.u32 2147483647, %v256
    %vm267 = vcmp.eq.f32.partialorder %v266, 8.507059e+37
    %v268 = vand.u32 %v256, 2147483648
    %v269 = vor.u32 1.1754944e-38, %v268
    %v270 = vsel %vm267, %v269, %v265
    %v271 = vmul.f32 1.0, %v270
    %273 = vrot.lane.b32.xlu0 %v250, 62
    %v274 = vpop.permute.xlu0 %273
    %v276 = vmul.f32 %v271, %v274
    %278 = vrot.lane.b32.xlu0 %v276, 66
    %v279 = vpop.permute.xlu0 %278
    %v281 = vadd.f32 %v197, %v279
    %v282 = vtanh.pop %v281
    %v283 = vsub.f32 1.0, %v271
    %285 = vrot.lane.b32.xlu0 %v282, 95
    %v286 = vpop.permute.xlu0 %285
    %v288 = vmul.f32 %v283, %v286
    %289 = vrot.lane.b32.xlu0 %v223, 33
    %v290 = vpop.permute.xlu0 %289
    %v292 = vmul.f32 %v271, %v290
    %v293 = vadd.f32 %v288, %v292
    %295 = vrot.lane.b32.xlu0 %v293, 95
    %v296 = vpop.permute.xlu0 %295
    %v297 = vsel %vm224, %v296, 0
    %299 = vmatpush.msra.mxu0 0.0
    %300 = vmatpush.msra.mxu0 0.0
    %301 = vmatpush.msra.mxu0 0.0
    %302 = vmatpush.msra.mxu0 0.0
    %303 = vmatpush.msra.mxu0 0.0
    %304 = vmatpush.msra.mxu0 0.0
    %305 = vmatpush.msra.mxu0 0.0
    %306 = vmatpush.msra.mxu0 0.0
    %307 = vmatpush.msra.mxu0 0.0
    %308 = vmatpush.msra.mxu0 0.0
    %309 = vmatpush.msra.mxu0 0.0
    %310 = vmatpush.msra.mxu0 %v230
    %311 = vmatpush.msra.mxu0 %v143
    %312 = vmatpush.msra.mxu0 %v142
    %313 = vmatpush.msra.mxu0 %v141
    %314 = vmatpush.msra.mxu0 %v140
    %315 = vmatmul.f32.gmra.mxu0 %v297
    %v316 = vpop.f32.mrf.mxu0
    %v317 = vadd.f32 0.0, %v316
    %318 = vdwg.mxu0
    %v319 = vadd.f32 %v200, %v317
    %v320 = vxor.u32 %v319, 2147483648
    %v321 = vmul.f32 %v320, 1.442695
    %v322 = vpow.pop %v321
    %v323 = vadd.f32 %v322, 1.0
    %v324 = vrcp.pop %v323
    %v325 = vmul.f32 %v323, %v324
    %v326 = vsub.f32 1.0, %v325
    %v327 = vmul.f32 %v324, %v326
    %v328 = vadd.f32 %v324, %v327
    %vm329 = vweird.f32 %v323
    %vm330 = vweird.f32 %v324
    %vm331 = vmor %vm329, %vm330
    %v332 = vsel %vm331, %v324, %v328
    %v333 = vand.u32 2147483647, %v323
    %vm334 = vcmp.eq.f32.partialorder %v333, 8.507059e+37
    %v335 = vand.u32 %v323, 2147483648
    %v336 = vor.u32 1.1754944e-38, %v335
    %v337 = vsel %vm334, %v336, %v332
    %v338 = vmul.f32 1.0, %v337
    %340 = vrot.lane.b32.xlu0 %v317, 62
    %v341 = vpop.permute.xlu0 %340
    %v343 = vmul.f32 %v338, %v341
    %345 = vrot.lane.b32.xlu0 %v343, 66
    %v346 = vpop.permute.xlu0 %345
    %v348 = vadd.f32 %v200, %v346
    %v349 = vtanh.pop %v348
    %v350 = vsub.f32 1.0, %v338
    %352 = vrot.lane.b32.xlu0 %v349, 95
    %v353 = vpop.permute.xlu0 %352
    %v355 = vmul.f32 %v350, %v353
    %v356 = vmul.f32 %v338, %v293
    %v357 = vadd.f32 %v355, %v356
    %359 = vrot.lane.b32.xlu0 %v357, 95
    %v360 = vpop.permute.xlu0 %359
    %v361 = vsel %vm224, %v360, 0
    %363 = vmatpush.msra.mxu0 0.0
    %364 = vmatpush.msra.mxu0 0.0
    %365 = vmatpush.msra.mxu0 0.0
    %366 = vmatpush.msra.mxu0 0.0
    %367 = vmatpush.msra.mxu0 0.0
    %368 = vmatpush.msra.mxu0 0.0
    %369 = vmatpush.msra.mxu0 0.0
    %370 = vmatpush.msra.mxu0 0.0
    %371 = vmatpush.msra.mxu0 0.0
    %372 = vmatpush.msra.mxu0 0.0
    %373 = vmatpush.msra.mxu0 0.0
    %374 = vmatpush.msra.mxu0 %v230
    %375 = vmatpush.msra.mxu0 %v143
    %376 = vmatpush.msra.mxu0 %v142
    %377 = vmatpush.msra.mxu0 %v141
    %378 = vmatpush.msra.mxu0 %v140
    %379 = vmatmul.f32.gmra.mxu0 %v361
    %v380 = vpop.f32.mrf.mxu0
    %v381 = vadd.f32 0.0, %v380
    %382 = vdwg.mxu0
    %v383 = vadd.f32 %v203, %v381
    %v384 = vxor.u32 %v383, 2147483648
    %v385 = vmul.f32 %v384, 1.442695
    %v386 = vpow.pop %v385
    %v387 = vadd.f32 %v386, 1.0
    %v388 = vrcp.pop %v387
    %v389 = vmul.f32 %v387, %v388
    %v390 = vsub.f32 1.0, %v389
    %v391 = vmul.f32 %v388, %v390
    %v392 = vadd.f32 %v388, %v391
    %vm393 = vweird.f32 %v387
    %vm394 = vweird.f32 %v388
    %vm395 = vmor %vm393, %vm394
    %v396 = vsel %vm395, %v388, %v392
    %v397 = vand.u32 2147483647, %v387
    %vm398 = vcmp.eq.f32.partialorder %v397, 8.507059e+37
    %v399 = vand.u32 %v387, 2147483648
    %v400 = vor.u32 1.1754944e-38, %v399
    %v401 = vsel %vm398, %v400, %v396
    %v402 = vmul.f32 1.0, %v401
    %404 = vrot.lane.b32.xlu0 %v381, 62
    %v405 = vpop.permute.xlu0 %404
    %v407 = vmul.f32 %v402, %v405
    %409 = vrot.lane.b32.xlu0 %v407, 66
    %v410 = vpop.permute.xlu0 %409
    %v412 = vadd.f32 %v203, %v410
    %v413 = vtanh.pop %v412
    %v414 = vsub.f32 1.0, %v402
    %416 = vrot.lane.b32.xlu0 %v413, 95
    %v417 = vpop.permute.xlu0 %416
    %v419 = vmul.f32 %v414, %v417
    %v420 = vmul.f32 %v402, %v357
    %v421 = vadd.f32 %v419, %v420
    %423 = vrot.lane.b32.xlu0 %v421, 95
    %v424 = vpop.permute.xlu0 %423
    %v425 = vsel %vm224, %v424, 0
    %427 = vmatpush.msra.mxu0 0.0
    %428 = vmatpush.msra.mxu0 0.0
    %429 = vmatpush.msra.mxu0 0.0
    %430 = vmatpush.msra.mxu0 0.0
    %431 = vmatpush.msra.mxu0 0.0
    %432 = vmatpush.msra.mxu0 0.0
    %433 = vmatpush.msra.mxu0 0.0
    %434 = vmatpush.msra.mxu0 0.0
    %435 = vmatpush.msra.mxu0 0.0
    %436 = vmatpush.msra.mxu0 0.0
    %437 = vmatpush.msra.mxu0 0.0
    %438 = vmatpush.msra.mxu0 %v230
    %439 = vmatpush.msra.mxu0 %v143
    %440 = vmatpush.msra.mxu0 %v142
    %441 = vmatpush.msra.mxu0 %v141
    %442 = vmatpush.msra.mxu0 %v140
    %443 = vmatmul.f32.gmra.mxu0 %v425
    %v444 = vpop.f32.mrf.mxu0
    %v445 = vadd.f32 0.0, %v444
    %446 = vdwg.mxu0
    %v447 = vadd.f32 %v206, %v445
    %v448 = vxor.u32 %v447, 2147483648
    %v449 = vmul.f32 %v448, 1.442695
    %v450 = vpow.pop %v449
    %v451 = vadd.f32 %v450, 1.0
    %v452 = vrcp.pop %v451
    %v453 = vmul.f32 %v451, %v452
    %v454 = vsub.f32 1.0, %v453
    %v455 = vmul.f32 %v452, %v454
    %v456 = vadd.f32 %v452, %v455
    %vm457 = vweird.f32 %v451
    %vm458 = vweird.f32 %v452
    %vm459 = vmor %vm457, %vm458
    %v460 = vsel %vm459, %v452, %v456
    %v461 = vand.u32 2147483647, %v451
    %vm462 = vcmp.eq.f32.partialorder %v461, 8.507059e+37
    %v463 = vand.u32 %v451, 2147483648
    %v464 = vor.u32 1.1754944e-38, %v463
    %v465 = vsel %vm462, %v464, %v460
    %v466 = vmul.f32 1.0, %v465
    %468 = vrot.lane.b32.xlu0 %v445, 62
    %v469 = vpop.permute.xlu0 %468
    %v471 = vmul.f32 %v466, %v469
    %473 = vrot.lane.b32.xlu0 %v471, 66
    %v474 = vpop.permute.xlu0 %473
    %v476 = vadd.f32 %v206, %v474
    %v477 = vtanh.pop %v476
    %v478 = vsub.f32 1.0, %v466
    %480 = vrot.lane.b32.xlu0 %v477, 95
    %v481 = vpop.permute.xlu0 %480
    %v483 = vmul.f32 %v478, %v481
    %v484 = vmul.f32 %v466, %v421
    %v485 = vadd.f32 %v483, %v484
    %487 = vrot.lane.b32.xlu0 %v485, 95
    %v488 = vpop.permute.xlu0 %487
    %v489 = vsel %vm224, %v488, 0
    %491 = vmatpush.msra.mxu0 0.0
    %492 = vmatpush.msra.mxu0 0.0
    %493 = vmatpush.msra.mxu0 0.0
    %494 = vmatpush.msra.mxu0 0.0
    %495 = vmatpush.msra.mxu0 0.0
    %496 = vmatpush.msra.mxu0 0.0
    %497 = vmatpush.msra.mxu0 0.0
    %498 = vmatpush.msra.mxu0 0.0
    %499 = vmatpush.msra.mxu0 0.0
    %500 = vmatpush.msra.mxu0 0.0
    %501 = vmatpush.msra.mxu0 0.0
    %502 = vmatpush.msra.mxu0 %v230
    %503 = vmatpush.msra.mxu0 %v143
    %504 = vmatpush.msra.mxu0 %v142
    %505 = vmatpush.msra.mxu0 %v141
    %506 = vmatpush.msra.mxu0 %v140
    %507 = vmatmul.f32.gmra.mxu0 %v489
    %v508 = vpop.f32.mrf.mxu0
    %v509 = vadd.f32 0.0, %v508
    %510 = vdwg.mxu0
    %v511 = vadd.f32 %v209, %v509
    %v512 = vxor.u32 %v511, 2147483648
    %v513 = vmul.f32 %v512, 1.442695
    %v514 = vpow.pop %v513
    %v515 = vadd.f32 %v514, 1.0
    %v516 = vrcp.pop %v515
    %v517 = vmul.f32 %v515, %v516
    %v518 = vsub.f32 1.0, %v517
    %v519 = vmul.f32 %v516, %v518
    %v520 = vadd.f32 %v516, %v519
    %vm521 = vweird.f32 %v515
    %vm522 = vweird.f32 %v516
    %vm523 = vmor %vm521, %vm522
    %v524 = vsel %vm523, %v516, %v520
    %v525 = vand.u32 2147483647, %v515
    %vm526 = vcmp.eq.f32.partialorder %v525, 8.507059e+37
    %v527 = vand.u32 %v515, 2147483648
    %v528 = vor.u32 1.1754944e-38, %v527
    %v529 = vsel %vm526, %v528, %v524
    %v530 = vmul.f32 1.0, %v529
    %532 = vrot.lane.b32.xlu0 %v509, 62
    %v533 = vpop.permute.xlu0 %532
    %v535 = vmul.f32 %v530, %v533
    %537 = vrot.lane.b32.xlu0 %v535, 66
    %v538 = vpop.permute.xlu0 %537
    %v540 = vadd.f32 %v209, %v538
    %v541 = vtanh.pop %v540
    %v542 = vsub.f32 1.0, %v530
    %544 = vrot.lane.b32.xlu0 %v541, 95
    %v545 = vpop.permute.xlu0 %544
    %v547 = vmul.f32 %v542, %v545
    %v548 = vmul.f32 %v530, %v485
    %v549 = vadd.f32 %v547, %v548
    %551 = vrot.lane.b32.xlu0 %v549, 95
    %v552 = vpop.permute.xlu0 %551
    %v553 = vsel %vm224, %v552, 0
    %555 = vmatpush.msra.mxu0 0.0
    %556 = vmatpush.msra.mxu0 0.0
    %557 = vmatpush.msra.mxu0 0.0
    %558 = vmatpush.msra.mxu0 0.0
    %559 = vmatpush.msra.mxu0 0.0
    %560 = vmatpush.msra.mxu0 0.0
    %561 = vmatpush.msra.mxu0 0.0
    %562 = vmatpush.msra.mxu0 0.0
    %563 = vmatpush.msra.mxu0 0.0
    %564 = vmatpush.msra.mxu0 0.0
    %565 = vmatpush.msra.mxu0 0.0
    %566 = vmatpush.msra.mxu0 %v230
    %567 = vmatpush.msra.mxu0 %v143
    %568 = vmatpush.msra.mxu0 %v142
    %569 = vmatpush.msra.mxu0 %v141
    %570 = vmatpush.msra.mxu0 %v140
    %571 = vmatmul.f32.gmra.mxu0 %v553
    %v572 = vpop.f32.mrf.mxu0
    %v573 = vadd.f32 0.0, %v572
    %574 = vdwg.mxu0
    %v575 = vadd.f32 %v212, %v573
    %v576 = vxor.u32 %v575, 2147483648
    %v577 = vmul.f32 %v576, 1.442695
    %v578 = vpow.pop %v577
    %v579 = vadd.f32 %v578, 1.0
    %v580 = vrcp.pop %v579
    %v581 = vmul.f32 %v579, %v580
    %v582 = vsub.f32 1.0, %v581
    %v583 = vmul.f32 %v580, %v582
    %v584 = vadd.f32 %v580, %v583
    %vm585 = vweird.f32 %v579
    %vm586 = vweird.f32 %v580
    %vm587 = vmor %vm585, %vm586
    %v588 = vsel %vm587, %v580, %v584
    %v589 = vand.u32 2147483647, %v579
    %vm590 = vcmp.eq.f32.partialorder %v589, 8.507059e+37
    %v591 = vand.u32 %v579, 2147483648
    %v592 = vor.u32 1.1754944e-38, %v591
    %v593 = vsel %vm590, %v592, %v588
    %v594 = vmul.f32 1.0, %v593
    %596 = vrot.lane.b32.xlu0 %v573, 62
    %v597 = vpop.permute.xlu0 %596
    %v599 = vmul.f32 %v594, %v597
    %601 = vrot.lane.b32.xlu0 %v599, 66
    %v602 = vpop.permute.xlu0 %601
    %v604 = vadd.f32 %v212, %v602
    %v605 = vtanh.pop %v604
    %v606 = vsub.f32 1.0, %v594
    %608 = vrot.lane.b32.xlu0 %v605, 95
    %v609 = vpop.permute.xlu0 %608
    %v611 = vmul.f32 %v606, %v609
    %v612 = vmul.f32 %v594, %v549
    %v613 = vadd.f32 %v611, %v612
    %615 = vrot.lane.b32.xlu0 %v613, 95
    %v616 = vpop.permute.xlu0 %615
    %v617 = vsel %vm224, %v616, 0
    %619 = vmatpush.msra.mxu0 0.0
    %620 = vmatpush.msra.mxu0 0.0
    %621 = vmatpush.msra.mxu0 0.0
    %622 = vmatpush.msra.mxu0 0.0
    %623 = vmatpush.msra.mxu0 0.0
    %624 = vmatpush.msra.mxu0 0.0
    %625 = vmatpush.msra.mxu0 0.0
    %626 = vmatpush.msra.mxu0 0.0
    %627 = vmatpush.msra.mxu0 0.0
    %628 = vmatpush.msra.mxu0 0.0
    %629 = vmatpush.msra.mxu0 0.0
    %630 = vmatpush.msra.mxu0 %v230
    %631 = vmatpush.msra.mxu0 %v143
    %632 = vmatpush.msra.mxu0 %v142
    %633 = vmatpush.msra.mxu0 %v141
    %634 = vmatpush.msra.mxu0 %v140
    %635 = vmatmul.f32.gmra.mxu0 %v617
    %v636 = vpop.f32.mrf.mxu0
    %v637 = vadd.f32 0.0, %v636
    %638 = vdwg.mxu0
    %v639 = vadd.f32 %v215, %v637
    %v640 = vxor.u32 %v639, 2147483648
    %v641 = vmul.f32 %v640, 1.442695
    %v642 = vpow.pop %v641
    %v643 = vadd.f32 %v642, 1.0
    %v644 = vrcp.pop %v643
    %v645 = vmul.f32 %v643, %v644
    %v646 = vsub.f32 1.0, %v645
    %v647 = vmul.f32 %v644, %v646
    %v648 = vadd.f32 %v644, %v647
    %vm649 = vweird.f32 %v643
    %vm650 = vweird.f32 %v644
    %vm651 = vmor %vm649, %vm650
    %v652 = vsel %vm651, %v644, %v648
    %v653 = vand.u32 2147483647, %v643
    %vm654 = vcmp.eq.f32.partialorder %v653, 8.507059e+37
    %v655 = vand.u32 %v643, 2147483648
    %v656 = vor.u32 1.1754944e-38, %v655
    %v657 = vsel %vm654, %v656, %v652
    %v658 = vmul.f32 1.0, %v657
    %660 = vrot.lane.b32.xlu0 %v637, 62
    %v661 = vpop.permute.xlu0 %660
    %v663 = vmul.f32 %v658, %v661
    %665 = vrot.lane.b32.xlu0 %v663, 66
    %v666 = vpop.permute.xlu0 %665
    %v668 = vadd.f32 %v215, %v666
    %v669 = vtanh.pop %v668
    %v670 = vsub.f32 1.0, %v658
    %672 = vrot.lane.b32.xlu0 %v669, 95
    %v673 = vpop.permute.xlu0 %672
    %v675 = vmul.f32 %v670, %v673
    %v676 = vmul.f32 %v658, %v613
    %v677 = vadd.f32 %v675, %v676
    %679 = vrot.lane.b32.xlu0 %v677, 95
    %v680 = vpop.permute.xlu0 %679
    %v681 = vsel %vm224, %v680, 0
    %683 = vmatpush.msra.mxu0 0.0
    %684 = vmatpush.msra.mxu0 0.0
    %685 = vmatpush.msra.mxu0 0.0
    %686 = vmatpush.msra.mxu0 0.0
    %687 = vmatpush.msra.mxu0 0.0
    %688 = vmatpush.msra.mxu0 0.0
    %689 = vmatpush.msra.mxu0 0.0
    %690 = vmatpush.msra.mxu0 0.0
    %691 = vmatpush.msra.mxu0 0.0
    %692 = vmatpush.msra.mxu0 0.0
    %693 = vmatpush.msra.mxu0 0.0
    %694 = vmatpush.msra.mxu0 %v230
    %695 = vmatpush.msra.mxu0 %v143
    %696 = vmatpush.msra.mxu0 %v142
    %697 = vmatpush.msra.mxu0 %v141
    %698 = vmatpush.msra.mxu0 %v140
    %699 = vmatmul.f32.gmra.mxu0 %v681
    %v700 = vpop.f32.mrf.mxu0
    %v701 = vadd.f32 0.0, %v700
    %702 = vdwg.mxu0
    %v703 = vadd.f32 %v218, %v701
    %v704 = vxor.u32 %v703, 2147483648
    %v705 = vmul.f32 %v704, 1.442695
    %v706 = vpow.pop %v705
    %v707 = vadd.f32 %v706, 1.0
    %v708 = vrcp.pop %v707
    %v709 = vmul.f32 %v707, %v708
    %v710 = vsub.f32 1.0, %v709
    %v711 = vmul.f32 %v708, %v710
    %v712 = vadd.f32 %v708, %v711
    %vm713 = vweird.f32 %v707
    %vm714 = vweird.f32 %v708
    %vm715 = vmor %vm713, %vm714
    %v716 = vsel %vm715, %v708, %v712
    %v717 = vand.u32 2147483647, %v707
    %vm718 = vcmp.eq.f32.partialorder %v717, 8.507059e+37
    %v719 = vand.u32 %v707, 2147483648
    %v720 = vor.u32 1.1754944e-38, %v719
    %v721 = vsel %vm718, %v720, %v716
    %v722 = vmul.f32 1.0, %v721
    %724 = vrot.lane.b32.xlu0 %v701, 62
    %v725 = vpop.permute.xlu0 %724
    %v727 = vmul.f32 %v722, %v725
    %729 = vrot.lane.b32.xlu0 %v727, 66
    %v730 = vpop.permute.xlu0 %729
    %v732 = vadd.f32 %v218, %v730
    %v733 = vtanh.pop %v732
    %v734 = vsub.f32 1.0, %v722
    %736 = vrot.lane.b32.xlu0 %v733, 95
    %v737 = vpop.permute.xlu0 %736
    %v739 = vmul.f32 %v734, %v737
    %v740 = vmul.f32 %v722, %v677
    %v741 = vadd.f32 %v739, %v740
    %v742 = vperm.slane %v144, 2
    %744 = vrot.lane.b32.xlu0 %v742, 33
    %v745 = vpop.permute.xlu0 %744
    %v747 = vmul.f32 %v741, %v745
    %749 = vrot.lane.b32.xlu0 %v747, 95
    %v750 = vpop.permute.xlu0 %749
    %v752 = vsel %vm224, %v750, 0.0
    %753 = vadd.xlane.f32.xlu0 %v752
    %v754 = vpop.xlane.xlu0 %753
    %vm755 = vcmask 7168
    %756 = vst.msk [vmem:[%s3] sm:$0xff] %vm755, %v754
    // Predicated region
    $region10: #{gru_model_forward.2} parent=1 // pred_check
      _
    $region11: #{gru_model_forward.2} parent=1 // pred_check_branch
      %758 = sbr.rel (0) target = $region13
    $region12: #{gru_model_forward.2} parent=1 // pred_region
      _
    $region13: #{gru_model_forward.2} parent=1 // pred_fallthru
      _
    // Predicated region
    $region14: #{gru_model_forward.2} parent=1 // pred_check
      _
    $region15: #{gru_model_forward.2} parent=1 // pred_check_branch
      %760 = sbr.rel (0) target = $region17
    $region16: #{gru_model_forward.2} parent=1 // pred_region
      _
    $region17: #{gru_model_forward.2} parent=1 // pred_fallthru
      _

</llo_original>
